<compile_context>
chip_gen: v6e
topology: v6e:2x2x1
jax: 0.10.0
libtpu: 0.0.40
codegen_flags: <defaults>
</compile_context>

<pallas_src>
import jax
import jax.numpy as jnp
from jax.experimental import pallas as pl
from jax.experimental.pallas import tpu as pltpu


def _input_attention_kernel(w_ref, b_ref, ctx_ref, emb_ref, lab_ref,
                            wemb_ref, attn_ref):
    """One block of B-rows.

    ctx_ref : (Bb, L, Dc)      emb_ref : (Bb, L, De)     lab_ref : (Bb, L) int
    w_ref   : (1, Dc)  VMEM    b_ref   : (1,) f32 SMEM
    wemb_ref: (Bb, De)         attn_ref: (Bb, L) f32
    """
    ctx = ctx_ref[...].astype(jnp.float32)
    w = w_ref[...].astype(jnp.float32).reshape(1, 1, -1)       # (1, 1, Dc)
    bias = b_ref[0]                                            # scalar (SMEM)

    # fc: Linear(Dc -> 1): scores[b, l] = <ctx[b, l, :], w> + bias
    # VPU broadcast-mul + lane reduce; result is lane-dense (Bb, L).
    scores = jnp.sum(ctx * w, axis=2) + bias                   # (Bb, L)

    # Fused softmax-over-L + label-mask + renormalize.  The softmax denominator
    # cancels against the post-mask renormalization, so one masked normalization
    # is algebraically identical to softmax -> mask -> renorm, including rows
    # whose labels are all zero (masked sum == 0 -> attn stays all-zero).
    m = jnp.max(scores, axis=1, keepdims=True)                 # (Bb, 1)
    e = jnp.exp(scores - m)                                    # (Bb, L)
    mask = (lab_ref[...] != 0).astype(jnp.float32)             # (Bb, L)
    masked = e * mask
    s = jnp.sum(masked, axis=1, keepdims=True)                 # (Bb, 1)
    attn = masked / jnp.where(s != 0.0, s, 1.0)                # exact divide (DMA-bound: free)
    attn_ref[...] = attn

    # weighted_emb[b, :] = sum_l attn[b, l] * emb[b, l, :]   (bmm with M == 1)
    # Single in-VMEM expand of attn to (Bb, L, 1); broadcast along lanes, reduce
    # over sublanes.
    emb = emb_ref[...].astype(jnp.float32)                     # (Bb, L, De)
    wemb = jnp.sum(attn[:, :, None] * emb, axis=1)             # (Bb, De)
    wemb_ref[...] = wemb.astype(wemb_ref.dtype)


def _round_up(x, m):
    return ((x + m - 1) // m) * m


def _tpu_vmem_and_cores():
    """Best-effort per-generation VMEM capacity and TensorCore count."""
    vmem_cap = 64 * 1024 * 1024        # conservative default (v7x per-TC VMEM)
    num_cores = 1
    try:
        info = pltpu.get_tpu_info()
        vmem_cap = int(getattr(info, "vmem_capacity_bytes", vmem_cap))
        num_cores = int(getattr(info, "num_cores", num_cores))
    except Exception:
        pass
    return vmem_cap, max(1, num_cores)


def module_input_attention(word_ctxfeats, word_embfeats, input_labels,
                           fc_weight, fc_bias, *, block_b=None):
    """word_ctxfeats: (bs, num_seq, L, Dc)   word_embfeats: (bs, num_seq, L, De)
       input_labels:  (bs, num_seq, L)       fc_weight: (1, Dc)   fc_bias: (1,)
       Returns (weighted_emb (bs, num_seq, De), attn (bs*num_seq, L))."""
    bs, num_seq, L, Dc = word_ctxfeats.shape
    De = word_embfeats.shape[-1]
    B = bs * num_seq

    # Free metadata reshapes only -- no copies, no padding, no dtype upcasts.
    ctx = word_ctxfeats.reshape(B, L, Dc)
    emb = word_embfeats.reshape(B, L, De)
    lab = input_labels.reshape(B, L)
    if lab.dtype == jnp.bool_:
        lab = lab.astype(jnp.int32)

    # --- VMEM-budgeted row-block size (generation aware) -------------------
    ctx_bytes = jnp.dtype(ctx.dtype).itemsize
    emb_bytes = jnp.dtype(emb.dtype).itemsize
    lab_bytes = jnp.dtype(lab.dtype).itemsize
    out_bytes = jnp.dtype(word_embfeats.dtype).itemsize
    per_row = (L * (Dc * ctx_bytes + De * emb_bytes + lab_bytes)
               + De * out_bytes + L * 4)                       # attn out is f32

    vmem_cap, num_cores = _tpu_vmem_and_cores()
    budget = max(1 << 20, int(vmem_cap * 0.45))                # double-buffered working set
    cap_rows = max(1, budget // (2 * per_row))

    if block_b is not None:
        block_b = B if block_b >= B else max(8, (block_b // 8) * 8)
    elif cap_rows >= B:
        if num_cores > 1 and B >= 16:
            # Multi-TC part: keep >= num_cores grid steps of equal size so the
            # "parallel" axis can shard across cores.
            block_b = min(_round_up(-(-B // num_cores), 8), B)
        else:
            # Single-TC (v5e/v6e): one big block, no per-step pipeline overhead.
            block_b = B
    else:
        block_b = max(8, (min(cap_rows, B) // 8) * 8)

    grid_b = -(-B // block_b)                                  # cdiv; last block may be ragged
    needed = 2 * block_b * per_row + Dc * 4
    vmem_limit = int(min(vmem_cap, max(needed + (4 << 20), 32 << 20)))

    wemb, attn = pl.pallas_call(
        _input_attention_kernel,
        out_shape=(
            jax.ShapeDtypeStruct((B, De), word_embfeats.dtype),
            jax.ShapeDtypeStruct((B, L), jnp.float32),
        ),
        grid_spec=pltpu.PrefetchScalarGridSpec(
            num_scalar_prefetch=0,
            grid=(grid_b,),
            in_specs=[
                pl.BlockSpec((1, Dc), lambda i: (0, 0)),              # fc weight (constant block)
                pl.BlockSpec(memory_space=pltpu.MemorySpace.SMEM),    # fc bias scalar
                pl.BlockSpec((block_b, L, Dc), lambda i: (i, 0, 0)),  # ctx feats
                pl.BlockSpec((block_b, L, De), lambda i: (i, 0, 0)),  # emb feats
                pl.BlockSpec((block_b, L), lambda i: (i, 0)),         # labels (lane-dense)
            ],
            out_specs=[
                pl.BlockSpec((block_b, De), lambda i: (i, 0)),        # weighted emb
                pl.BlockSpec((block_b, L), lambda i: (i, 0)),         # attn (lane-dense)
            ],
        ),
        compiler_params=pltpu.CompilerParams(
            dimension_semantics=("parallel",),
            vmem_limit_bytes=vmem_limit),
    )(fc_weight, fc_bias.reshape(1).astype(jnp.float32), ctx, emb, lab)

    return wemb.reshape(bs, num_seq, De), attn


def _reference(word_ctxfeats, word_embfeats, input_labels, fc_weight, fc_bias):
    """Un-fused reference that mirrors the PyTorch module step by step."""
    bs, num_seq, L, Dc = word_ctxfeats.shape
    B = bs * num_seq
    ctx = word_ctxfeats.reshape(B, L, Dc).astype(jnp.float32)
    emb = word_embfeats.reshape(B, L, -1).astype(jnp.float32)
    lab = input_labels.reshape(B, L)
    scores = ctx @ fc_weight[0].astype(jnp.float32) + fc_bias[0].astype(jnp.float32)
    attn = jax.nn.softmax(scores, axis=1)
    attn = attn * (lab != 0).astype(jnp.float32)
    s = attn.sum(1, keepdims=True)
    attn = jnp.where(s != 0.0, attn / jnp.where(s != 0.0, s, 1.0), attn)
    wemb = jnp.einsum('bl,ble->be', attn, emb)
    return wemb.reshape(bs, num_seq, -1), attn


if __name__ == "__main__":
    bs, num_seq, max_length = 2, 8, 8
    ctx_dim, emb_dim = 32, 32

    key = jax.random.PRNGKey(0)
    k1, k2, k3, k4, k5 = jax.random.split(key, 5)

    word_ctxfeats = jax.random.normal(k1, (bs, num_seq, max_length, ctx_dim),
                                      dtype=jnp.float32)
    word_embfeats = jax.random.normal(k2, (bs, num_seq, max_length, emb_dim),
                                      dtype=jnp.float32)
    input_labels = jax.random.randint(k3, (bs, num_seq, max_length), 0, 5,
                                      dtype=jnp.int32)
    # force one fully-padded sequence to exercise the attn_sum == 0 branch
    input_labels = input_labels.at[0, 0, :].set(0)

    # deterministic nn.Linear(ctx_dim, 1) params: weight (1, ctx_dim), bias (1,)
    fc_weight = jax.random.normal(k4, (1, ctx_dim), dtype=jnp.float32) * 0.1
    fc_bias = jax.random.normal(k5, (1,), dtype=jnp.float32) * 0.1

    # --- test 1: f32 inputs, single-block (or per-core) grid ----------------
    wemb, attn = module_input_attention(word_ctxfeats, word_embfeats,
                                        input_labels, fc_weight, fc_bias)
    jax.block_until_ready((wemb, attn))

    wemb_ref, attn_ref = _reference(word_ctxfeats, word_embfeats,
                                    input_labels, fc_weight, fc_bias)
    assert wemb.shape == (bs, num_seq, emb_dim)
    assert attn.shape == (bs * num_seq, max_length)
    assert jnp.allclose(attn, attn_ref, atol=1e-4, rtol=1e-4)
    assert jnp.allclose(wemb, wemb_ref, atol=1e-4, rtol=1e-4)

    # --- test 2: bf16 inputs, multi-step grid with a ragged last block ------
    ns2 = 5                                       # B = 10, block_b = 8 -> grid of 2, last block ragged
    ctx2 = word_ctxfeats[:, :ns2].astype(jnp.bfloat16)
    emb2 = word_embfeats[:, :ns2].astype(jnp.bfloat16)
    lab2 = input_labels[:, :ns2]
    wemb2, attn2 = module_input_attention(ctx2, emb2, lab2, fc_weight, fc_bias,
                                          block_b=8)
    jax.block_until_ready((wemb2, attn2))

    wemb2_ref, attn2_ref = _reference(ctx2, emb2, lab2, fc_weight, fc_bias)
    assert wemb2.shape == (bs, ns2, emb_dim)
    assert attn2.shape == (bs * ns2, max_length)
    assert jnp.allclose(attn2, attn2_ref, atol=1e-3, rtol=1e-3)
    # wemb2 is emitted in bf16 (input dtype), so compare with bf16-level tolerance.
    assert jnp.allclose(wemb2.astype(jnp.float32), wemb2_ref, atol=3e-2, rtol=3e-2)

    print("KERNEL_OK")
</pallas_src>

<mosaic_0001>
module attributes {stable_mosaic.version = 11 : i64} {
  func.func @_input_attention_kernel(%arg0: i32, %arg1: memref<1x32xf32, #tpu.memory_space<vmem>>, %arg2: memref<1xf32, #tpu.memory_space<smem>>, %arg3: memref<16x8x32xf32, #tpu.memory_space<vmem>>, %arg4: memref<16x8x32xf32, #tpu.memory_space<vmem>>, %arg5: memref<16x8xi32, #tpu.memory_space<vmem>>, %arg6: memref<16x32xf32, #tpu.memory_space<vmem>>, %arg7: memref<16x8xf32, #tpu.memory_space<vmem>>) attributes {dimension_semantics = [#tpu.dimension_semantics<parallel>], iteration_bounds = array<i64: 1>, scalar_prefetch = 0 : i64, scratch_operands = 0 : i64, tpu.core_type = #tpu.core_type<tc>, window_params = [{pipeline_mode = #tpu.pipeline_mode<synchronous>, transform_indices = @transform_0, window_bounds = array<i64: 1, 32>}, {transform_indices = @transform_1, window_bounds = array<i64: 1>}, {transform_indices = @transform_2, window_bounds = array<i64: 16, 8, 32>}, {transform_indices = @transform_3, window_bounds = array<i64: 16, 8, 32>}, {transform_indices = @transform_4, window_bounds = array<i64: 16, 8>}, {transform_indices = @transform_5, window_bounds = array<i64: 16, 32>}, {transform_indices = @transform_6, window_bounds = array<i64: 16, 8>}]} {
    %c0 = arith.constant 0 : index
    %c0_0 = arith.constant 0 : index
    %c0_1 = arith.constant 0 : index
    %0 = vector.load %arg3[%c0, %c0_0, %c0_1] : memref<16x8x32xf32, #tpu.memory_space<vmem>>, vector<16x8x32xf32>
    %c0_2 = arith.constant 0 : index
    %c0_3 = arith.constant 0 : index
    %1 = vector.load %arg1[%c0_2, %c0_3] : memref<1x32xf32, #tpu.memory_space<vmem>>, vector<1x32xf32>
    %2 = vector.shape_cast %1 : vector<1x32xf32> to vector<1x1x32xf32>
    %c0_4 = arith.constant 0 : index
    %3 = memref.load %arg2[%c0_4] : memref<1xf32, #tpu.memory_space<smem>>
    %4 = vector.broadcast %2 : vector<1x1x32xf32> to vector<16x8x32xf32>
    %5 = arith.mulf %0, %4 : vector<16x8x32xf32>
    %cst = arith.constant dense<0.000000e+00> : vector<16x8xf32>
    %6 = vector.multi_reduction <add>, %5, %cst [2] : vector<16x8x32xf32> to vector<16x8xf32>
    %7 = vector.broadcast %3 : f32 to vector<16x8xf32>
    %8 = arith.addf %6, %7 : vector<16x8xf32>
    %cst_5 = arith.constant dense<0xFF800000> : vector<16xf32>
    %9 = vector.multi_reduction <maximumf>, %8, %cst_5 [1] : vector<16x8xf32> to vector<16xf32>
    %10 = vector.shape_cast %9 : vector<16xf32> to vector<16x1xf32>
    %11 = vector.broadcast %10 : vector<16x1xf32> to vector<16x8xf32>
    %12 = arith.subf %8, %11 : vector<16x8xf32>
    %13 = math.exp %12 : vector<16x8xf32>
    %c0_6 = arith.constant 0 : index
    %c0_7 = arith.constant 0 : index
    %14 = vector.load %arg5[%c0_6, %c0_7] : memref<16x8xi32, #tpu.memory_space<vmem>>, vector<16x8xi32>
    %c0_i32 = arith.constant 0 : i32
    %15 = vector.broadcast %c0_i32 : i32 to vector<16x8xi32>
    %16 = arith.cmpi ne, %14, %15 : vector<16x8xi32>
    %17 = arith.extui %16 : vector<16x8xi1> to vector<16x8xi32>
    %18 = arith.sitofp %17 : vector<16x8xi32> to vector<16x8xf32>
    %19 = arith.mulf %13, %18 : vector<16x8xf32>
    %cst_8 = arith.constant dense<0.000000e+00> : vector<16xf32>
    %20 = vector.multi_reduction <add>, %19, %cst_8 [1] : vector<16x8xf32> to vector<16xf32>
    %21 = vector.shape_cast %20 : vector<16xf32> to vector<16x1xf32>
    %cst_9 = arith.constant 0.000000e+00 : f32
    %22 = vector.broadcast %cst_9 : f32 to vector<16x1xf32>
    %23 = arith.cmpf one, %21, %22 : vector<16x1xf32>
    %cst_10 = arith.constant 1.000000e+00 : f32
    %24 = vector.broadcast %cst_10 : f32 to vector<16x1xf32>
    %25 = arith.select %23, %21, %24 : vector<16x1xi1>, vector<16x1xf32>
    %26 = vector.broadcast %25 : vector<16x1xf32> to vector<16x8xf32>
    %27 = arith.divf %19, %26 : vector<16x8xf32>
    %c0_11 = arith.constant 0 : index
    %c0_12 = arith.constant 0 : index
    %28 = vector.load %arg7[%c0_11, %c0_12] : memref<16x8xf32, #tpu.memory_space<vmem>>, vector<16x8xf32>
    tpu.vector_store %arg7[%c0_11, %c0_12], %27 {strides = array<i32>} : memref<16x8xf32, #tpu.memory_space<vmem>>, vector<16x8xf32>,
    %c0_13 = arith.constant 0 : index
    %c0_14 = arith.constant 0 : index
    %c0_15 = arith.constant 0 : index
    %29 = vector.load %arg4[%c0_13, %c0_14, %c0_15] : memref<16x8x32xf32, #tpu.memory_space<vmem>>, vector<16x8x32xf32>
    %30 = vector.shape_cast %27 : vector<16x8xf32> to vector<16x8x1xf32>
    %31 = vector.broadcast %30 : vector<16x8x1xf32> to vector<16x8x32xf32>
    %32 = arith.mulf %31, %29 : vector<16x8x32xf32>
    %cst_16 = arith.constant dense<0.000000e+00> : vector<16x32xf32>
    %33 = vector.multi_reduction <add>, %32, %cst_16 [1] : vector<16x8x32xf32> to vector<16x32xf32>
    %c0_17 = arith.constant 0 : index
    %c0_18 = arith.constant 0 : index
    %34 = vector.load %arg6[%c0_17, %c0_18] : memref<16x32xf32, #tpu.memory_space<vmem>>, vector<16x32xf32>
    tpu.vector_store %arg6[%c0_17, %c0_18], %33 {strides = array<i32>} : memref<16x32xf32, #tpu.memory_space<vmem>>, vector<16x32xf32>,
    return
  }
  func.func @transform_0(%arg0: i32) -> (i32, i32) {
    %c0_i32 = arith.constant 0 : i32
    %c0_i32_0 = arith.constant 0 : i32
    %c0_i32_1 = arith.constant 0 : i32
    return %c0_i32, %c0_i32_0 : i32, i32
  }
  func.func @transform_1(%arg0: i32) -> i32 {
    %c0_i32 = arith.constant 0 : i32
    %c0_i32_0 = arith.constant 0 : i32
    return %c0_i32 : i32
  }
  func.func @transform_2(%arg0: i32) -> (i32, i32, i32) {
    %c0_i32 = arith.constant 0 : i32
    %c0_i32_0 = arith.constant 0 : i32
    %c0_i32_1 = arith.constant 0 : i32
    return %arg0, %c0_i32, %c0_i32_0 : i32, i32, i32
  }
  func.func @transform_3(%arg0: i32) -> (i32, i32, i32) {
    %c0_i32 = arith.constant 0 : i32
    %c0_i32_0 = arith.constant 0 : i32
    %c0_i32_1 = arith.constant 0 : i32
    return %arg0, %c0_i32, %c0_i32_0 : i32, i32, i32
  }
  func.func @transform_4(%arg0: i32) -> (i32, i32) {
    %c0_i32 = arith.constant 0 : i32
    %c0_i32_0 = arith.constant 0 : i32
    return %arg0, %c0_i32 : i32, i32
  }
  func.func @transform_5(%arg0: i32) -> (i32, i32) {
    %c0_i32 = arith.constant 0 : i32
    %c0_i32_0 = arith.constant 0 : i32
    return %arg0, %c0_i32 : i32, i32
  }
  func.func @transform_6(%arg0: i32) -> (i32, i32) {
    %c0_i32 = arith.constant 0 : i32
    %c0_i32_0 = arith.constant 0 : i32
    return %arg0, %c0_i32 : i32, i32
  }
}

</mosaic_0001>

<llo_original>
// kernel: tpu_custom_call.1
$region0: #{tpu_custom_call.1}
  #allocation0 [shape = 'u32[]', space=smem, size = 0x4, offset = 0x4, fixed_abs, tag = 'smem constant byte address 0x4 - core index']
  #allocation1 [shape = 'u32[144,128]{1,0:T(1,128)}', space=vmem, size = 0x12000, scoped, tag = 'internal scratch']
  #allocation2 [shape = 'f32[1]{0:T(128)S(6)}', space=smem, size = 0x200, scoped, tag = 'scoped memory for tpu_custom_call.1']
  %s0 = inlined_call_operand.vmem [shape: f32[1,32], index: 0, kind: input, shape index: {}]
  %s1 = inlined_call_operand.<no memory space> [shape: f32[1], index: 1, kind: input, shape index: {}]
  %s2 = inlined_call_operand.hbm [shape: f32[16,8,32], index: 2, kind: input, shape index: {}]
  %s3 = inlined_call_operand.hbm [shape: f32[16,8,32], index: 3, kind: input, shape index: {}]
  %s4 = inlined_call_operand.vmem [shape: s32[16,8], index: 4, kind: input, shape index: {}]
  %s5 = inlined_call_operand.hbm [shape: f32[16,32], index: 5, kind: output, shape index: {0}]
  %s6 = inlined_call_operand.vmem [shape: f32[16,8], index: 6, kind: output, shape index: {1}]
  %7 = xla_tuple %s5, %s6
  %s8 = sld [smem:[#allocation0]]
  $region46: #{tpu_custom_call.1} parent=0
    _
  %s10 = ssub.s32 1, %s8
  %s11 = scalar_select 0, %s10, %s8
  %12 = sst [smem:[#allocation2]] %s1
  $region1: #{tpu_custom_call.1} parent=0
    #allocation3 [shape = 'u8[65536]{0}', space=vmem, size = 0x10000, scoped, tag = 'input window, operand 2, single buffered']
    #allocation4 [shape = 's32[1]{0}', space=sflag, size = 0x4, scoped, tag = 'scoped memory for tpu_custom_call.1']
    #allocation5 [shape = 's32[1]{0}', space=sflag, size = 0x4, scoped, tag = 'scoped memory for tpu_custom_call.1']
    #allocation6 [shape = 'u8[65536]{0}', space=vmem, size = 0x10000, scoped, tag = 'input window, operand 3, single buffered']
    #allocation7 [shape = 's32[1]{0}', space=sflag, size = 0x4, scoped, tag = 'scoped memory for tpu_custom_call.1']
    #allocation8 [shape = 'u8[8192]{0}', space=vmem, size = 0x2000, scoped, tag = 'output window, operand 0, single buffered']
    %13 = vsyncpa [#allocation4], 0
    %14 = vsyncpa [#allocation7], 0
    %15 = vsyncpa [#allocation5], 0
    // Predicated region
    $region2: #{tpu_custom_call.1} parent=1 // pred_check
      _
    $region3: #{tpu_custom_call.1} parent=1 // pred_check_branch
      %17 = sbr.rel (0) target = $region5
    $region4: #{tpu_custom_call.1} parent=1 // pred_region
      _
    $region5: #{tpu_custom_call.1} parent=1 // pred_fallthru
      _
    // Predicated region
    $region6: #{tpu_custom_call.1} parent=1 // pred_check
      _
    $region7: #{tpu_custom_call.1} parent=1 // pred_check_branch
      %19 = sbr.rel (0) target = $region9
    $region8: #{tpu_custom_call.1} parent=1 // pred_region
      _
    $region9: #{tpu_custom_call.1} parent=1 // pred_fallthru
      _
    // Predicated region
    $region10: #{tpu_custom_call.1} parent=1 // pred_check
      _
    $region11: #{tpu_custom_call.1} parent=1 // pred_check_branch
      %21 = sbr.rel (0) target = $region13
    $region12: #{tpu_custom_call.1} parent=1 // pred_region
      %s23 = ssub.s32 2048, 2048
      %24 = vsyncadd [#allocation4], %s23
      %s25 = sshll.u32 [#allocation3], 4
      %s26 = int_to_ptr.vmem [resolvable:$true] %s25
      %31 = dma.hbm_to_vmem [thread:$0]  %s2, 2048, %s26, [#allocation4], 128, 128, 8
    $region13: #{tpu_custom_call.1} parent=1 // pred_fallthru
      _
    // Predicated region
    $region14: #{tpu_custom_call.1} parent=1 // pred_check
      _
    $region15: #{tpu_custom_call.1} parent=1 // pred_check_branch
      %33 = sbr.rel (0) target = $region17
    $region16: #{tpu_custom_call.1} parent=1 // pred_region
      %s35 = ssub.s32 2048, 2048
      %36 = vsyncadd [#allocation7], %s35
      %s37 = sshll.u32 [#allocation6], 4
      %s38 = int_to_ptr.vmem [resolvable:$true] %s37
      %43 = dma.hbm_to_vmem [thread:$0]  %s3, 2048, %s38, [#allocation7], 128, 128, 8
    $region17: #{tpu_custom_call.1} parent=1 // pred_fallthru
      _
    // Predicated region
    $region18: #{tpu_custom_call.1} parent=1 // pred_check
      _
    $region19: #{tpu_custom_call.1} parent=1 // pred_check_branch
      %45 = sbr.rel (0) target = $region21
    $region20: #{tpu_custom_call.1} parent=1 // pred_region
      _
    $region21: #{tpu_custom_call.1} parent=1 // pred_fallthru
      _
    // Predicated region
    $region22: #{tpu_custom_call.1} parent=1 // pred_check
      _
    $region23: #{tpu_custom_call.1} parent=1 // pred_check_branch
      %47 = sbr.rel (0) target = $region25
    $region24: #{tpu_custom_call.1} parent=1 // pred_region
      %48 = dma.done [#allocation4], 2048
    $region25: #{tpu_custom_call.1} parent=1 // pred_fallthru
      _
    // Predicated region
    $region26: #{tpu_custom_call.1} parent=1 // pred_check
      _
    $region27: #{tpu_custom_call.1} parent=1 // pred_check_branch
      %50 = sbr.rel (0) target = $region29
    $region28: #{tpu_custom_call.1} parent=1 // pred_region
      %51 = dma.done [#allocation7], 2048
    $region29: #{tpu_custom_call.1} parent=1 // pred_fallthru
      _
    %v52 = vld [vmem:[#allocation3] sm:$0xff]
    %v53 = vld [vmem:[#allocation3 + $0x8] sm:$0xff]
    %v54 = vld [vmem:[#allocation3 + $0x10] sm:$0xff]
    %v55 = vld [vmem:[#allocation3 + $0x18] sm:$0xff]
    %v56 = vld [vmem:[#allocation3 + $0x20] sm:$0xff]
    %v57 = vld [vmem:[#allocation3 + $0x28] sm:$0xff]
    %v58 = vld [vmem:[#allocation3 + $0x30] sm:$0xff]
    %v59 = vld [vmem:[#allocation3 + $0x38] sm:$0xff]
    %v60 = vld [vmem:[#allocation3 + $0x40] sm:$0xff]
    %v61 = vld [vmem:[#allocation3 + $0x48] sm:$0xff]
    %v62 = vld [vmem:[#allocation3 + $0x50] sm:$0xff]
    %v63 = vld [vmem:[#allocation3 + $0x58] sm:$0xff]
    %v64 = vld [vmem:[#allocation3 + $0x60] sm:$0xff]
    %v65 = vld [vmem:[#allocation3 + $0x68] sm:$0xff]
    %v66 = vld [vmem:[#allocation3 + $0x70] sm:$0xff]
    %v67 = vld [vmem:[#allocation3 + $0x78] sm:$0xff]
    %v68 = vld [vmem:[%s0] sm:$0x1]
    %s69 = sld [smem:[#allocation2]]
    %v71 = vlaneseq
    %v72 = vshrl.u32 %v71, 7
    %v73 = vsub.s32 0, %v72
    %v74 = vrot.slane %v68, %v73
    %v76 = vmul.f32 %v52, %v74
    %v77 = vmul.f32 %v53, %v74
    %v78 = vmul.f32 %v54, %v74
    %v79 = vmul.f32 %v55, %v74
    %v80 = vmul.f32 %v56, %v74
    %v81 = vmul.f32 %v57, %v74
    %v82 = vmul.f32 %v58, %v74
    %v83 = vmul.f32 %v59, %v74
    %v84 = vmul.f32 %v60, %v74
    %v85 = vmul.f32 %v61, %v74
    %v86 = vmul.f32 %v62, %v74
    %v87 = vmul.f32 %v63, %v74
    %v88 = vmul.f32 %v64, %v74
    %v89 = vmul.f32 %v65, %v74
    %v90 = vmul.f32 %v66, %v74
    %v91 = vmul.f32 %v67, %v74
    %vm92 = vcmask 261120
    %v93 = vsel %vm92, %v76, 0.0
    %94 = vadd.xlane.f32.xlu0 %v93
    %v95 = vpop.xlane.xlu0 %94
    %v96 = vsel %vm92, %v77, 0.0
    %97 = vadd.xlane.f32.xlu0 %v96
    %v98 = vpop.xlane.xlu0 %97
    %v99 = vsel %vm92, %v78, 0.0
    %100 = vadd.xlane.f32.xlu0 %v99
    %v101 = vpop.xlane.xlu0 %100
    %v102 = vsel %vm92, %v79, 0.0
    %103 = vadd.xlane.f32.xlu0 %v102
    %v104 = vpop.xlane.xlu0 %103
    %v105 = vsel %vm92, %v80, 0.0
    %106 = vadd.xlane.f32.xlu0 %v105
    %v107 = vpop.xlane.xlu0 %106
    %v108 = vsel %vm92, %v81, 0.0
    %109 = vadd.xlane.f32.xlu0 %v108
    %v110 = vpop.xlane.xlu0 %109
    %v111 = vsel %vm92, %v82, 0.0
    %112 = vadd.xlane.f32.xlu0 %v111
    %v113 = vpop.xlane.xlu0 %112
    %v114 = vsel %vm92, %v83, 0.0
    %115 = vadd.xlane.f32.xlu0 %v114
    %v116 = vpop.xlane.xlu0 %115
    %v117 = vsel %vm92, %v84, 0.0
    %118 = vadd.xlane.f32.xlu0 %v117
    %v119 = vpop.xlane.xlu0 %118
    %v120 = vsel %vm92, %v85, 0.0
    %121 = vadd.xlane.f32.xlu0 %v120
    %v122 = vpop.xlane.xlu0 %121
    %v123 = vsel %vm92, %v86, 0.0
    %124 = vadd.xlane.f32.xlu0 %v123
    %v125 = vpop.xlane.xlu0 %124
    %v126 = vsel %vm92, %v87, 0.0
    %127 = vadd.xlane.f32.xlu0 %v126
    %v128 = vpop.xlane.xlu0 %127
    %v129 = vsel %vm92, %v88, 0.0
    %130 = vadd.xlane.f32.xlu0 %v129
    %v131 = vpop.xlane.xlu0 %130
    %v132 = vsel %vm92, %v89, 0.0
    %133 = vadd.xlane.f32.xlu0 %v132
    %v134 = vpop.xlane.xlu0 %133
    %v135 = vsel %vm92, %v90, 0.0
    %136 = vadd.xlane.f32.xlu0 %v135
    %v137 = vpop.xlane.xlu0 %136
    %v138 = vsel %vm92, %v91, 0.0
    %139 = vadd.xlane.f32.xlu0 %v138
    %v140 = vpop.xlane.xlu0 %139
    %v141 = vstv %s69
    %v142 = vadd.f32 %v95, %v141
    %v143 = vadd.f32 %v98, %v141
    %v144 = vadd.f32 %v101, %v141
    %v145 = vadd.f32 %v104, %v141
    %v146 = vadd.f32 %v107, %v141
    %v147 = vadd.f32 %v110, %v141
    %v148 = vadd.f32 %v113, %v141
    %v149 = vadd.f32 %v116, %v141
    %v150 = vadd.f32 %v119, %v141
    %v151 = vadd.f32 %v122, %v141
    %v152 = vadd.f32 %v125, %v141
    %v153 = vadd.f32 %v128, %v141
    %v154 = vadd.f32 %v131, %v141
    %v155 = vadd.f32 %v134, %v141
    %v156 = vadd.f32 %v137, %v141
    %v157 = vadd.f32 %v140, %v141
    %v174 = vlaneseq
    %v175 = vand.u32 %v174, 127
    %v176 = vlaneseq
    %v177 = vshrl.u32 %v176, 7
    %v178 = vsub.s32 %v175, %v177
    %v179 = vrot.slane %v142, %v178
    %v180 = vlaneseq
    %v181 = vshrl.u32 %v180, 7
    %v182 = vsub.s32 %v175, %v181
    %v183 = vrot.slane %v143, %v182
    %v184 = vlaneseq
    %v185 = vshrl.u32 %v184, 7
    %v186 = vsub.s32 %v175, %v185
    %v187 = vrot.slane %v144, %v186
    %v188 = vlaneseq
    %v189 = vshrl.u32 %v188, 7
    %v190 = vsub.s32 %v175, %v189
    %v191 = vrot.slane %v145, %v190
    %v192 = vlaneseq
    %v193 = vshrl.u32 %v192, 7
    %v194 = vsub.s32 %v175, %v193
    %v195 = vrot.slane %v146, %v194
    %v196 = vlaneseq
    %v197 = vshrl.u32 %v196, 7
    %v198 = vsub.s32 %v175, %v197
    %v199 = vrot.slane %v147, %v198
    %v200 = vlaneseq
    %v201 = vshrl.u32 %v200, 7
    %v202 = vsub.s32 %v175, %v201
    %v203 = vrot.slane %v148, %v202
    %v204 = vlaneseq
    %v205 = vshrl.u32 %v204, 7
    %v206 = vsub.s32 %v175, %v205
    %v207 = vrot.slane %v149, %v206
    %v208 = vlaneseq
    %v209 = vshrl.u32 %v208, 7
    %v210 = vsub.s32 %v175, %v209
    %v211 = vrot.slane %v150, %v210
    %v212 = vlaneseq
    %v213 = vshrl.u32 %v212, 7
    %v214 = vsub.s32 %v175, %v213
    %v215 = vrot.slane %v151, %v214
    %v216 = vlaneseq
    %v217 = vshrl.u32 %v216, 7
    %v218 = vsub.s32 %v175, %v217
    %v219 = vrot.slane %v152, %v218
    %v220 = vlaneseq
    %v221 = vshrl.u32 %v220, 7
    %v222 = vsub.s32 %v175, %v221
    %v223 = vrot.slane %v153, %v222
    %v224 = vlaneseq
    %v225 = vshrl.u32 %v224, 7
    %v226 = vsub.s32 %v175, %v225
    %v227 = vrot.slane %v154, %v226
    %v228 = vlaneseq
    %v229 = vshrl.u32 %v228, 7
    %v230 = vsub.s32 %v175, %v229
    %v231 = vrot.slane %v155, %v230
    %v232 = vlaneseq
    %v233 = vshrl.u32 %v232, 7
    %v234 = vsub.s32 %v175, %v233
    %v235 = vrot.slane %v156, %v234
    %v236 = vlaneseq
    %v237 = vshrl.u32 %v236, 7
    %v238 = vsub.s32 %v175, %v237
    %v239 = vrot.slane %v157, %v238
    %vm240 = vcmask 1041409
    %v241 = vsel %vm240, %v183, %v179
    %vm242 = vcmask 1042434
    %v243 = vsel %vm242, %v187, %v241
    %vm244 = vcmask 1043459
    %v245 = vsel %vm244, %v191, %v243
    %vm246 = vcmask 1044484
    %v247 = vsel %vm246, %v195, %v245
    %vm248 = vcmask 1045509
    %v249 = vsel %vm248, %v199, %v247
    %vm250 = vcmask 1046534
    %v251 = vsel %vm250, %v203, %v249
    %vm252 = vcmask 1047559
    %v253 = vsel %vm252, %v207, %v251
    %v254 = vsel %vm240, %v215, %v211
    %v255 = vsel %vm242, %v219, %v254
    %v256 = vsel %vm244, %v223, %v255
    %v257 = vsel %vm246, %v227, %v256
    %v258 = vsel %vm248, %v231, %v257
    %v259 = vsel %vm250, %v235, %v258
    %v260 = vsel %vm252, %v239, %v259
    %vm263 = vcmask 64512
    %v264 = vsel %vm263, %v253, -inf
    %265 = vmax.xlane.f32.xlu0 %v264
    %v266 = vpop.xlane.xlu0 %265
    %v267 = vsel %vm263, %v260, -inf
    %268 = vmax.xlane.f32.xlu0 %v267
    %v269 = vpop.xlane.xlu0 %268
    %v272 = vlaneseq
    %v273 = vshrl.u32 %v272, 7
    %v274 = vsub.s32 0, %v273
    %v275 = vrot.slane %v266, %v274
    %v276 = vlaneseq
    %v277 = vshrl.u32 %v276, 7
    %v278 = vsub.s32 1, %v277
    %v279 = vrot.slane %v266, %v278
    %v280 = vlaneseq
    %v281 = vshrl.u32 %v280, 7
    %v282 = vsub.s32 2, %v281
    %v283 = vrot.slane %v266, %v282
    %v284 = vlaneseq
    %v285 = vshrl.u32 %v284, 7
    %v286 = vsub.s32 3, %v285
    %v287 = vrot.slane %v266, %v286
    %v288 = vlaneseq
    %v289 = vshrl.u32 %v288, 7
    %v290 = vsub.s32 4, %v289
    %v291 = vrot.slane %v266, %v290
    %v292 = vlaneseq
    %v293 = vshrl.u32 %v292, 7
    %v294 = vsub.s32 5, %v293
    %v295 = vrot.slane %v266, %v294
    %v296 = vlaneseq
    %v297 = vshrl.u32 %v296, 7
    %v298 = vsub.s32 6, %v297
    %v299 = vrot.slane %v266, %v298
    %v300 = vlaneseq
    %v301 = vshrl.u32 %v300, 7
    %v302 = vsub.s32 7, %v301
    %v303 = vrot.slane %v266, %v302
    %v304 = vlaneseq
    %v305 = vshrl.u32 %v304, 7
    %v306 = vsub.s32 0, %v305
    %v307 = vrot.slane %v269, %v306
    %v308 = vlaneseq
    %v309 = vshrl.u32 %v308, 7
    %v310 = vsub.s32 1, %v309
    %v311 = vrot.slane %v269, %v310
    %v312 = vlaneseq
    %v313 = vshrl.u32 %v312, 7
    %v314 = vsub.s32 2, %v313
    %v315 = vrot.slane %v269, %v314
    %v316 = vlaneseq
    %v317 = vshrl.u32 %v316, 7
    %v318 = vsub.s32 3, %v317
    %v319 = vrot.slane %v269, %v318
    %v320 = vlaneseq
    %v321 = vshrl.u32 %v320, 7
    %v322 = vsub.s32 4, %v321
    %v323 = vrot.slane %v269, %v322
    %v324 = vlaneseq
    %v325 = vshrl.u32 %v324, 7
    %v326 = vsub.s32 5, %v325
    %v327 = vrot.slane %v269, %v326
    %v328 = vlaneseq
    %v329 = vshrl.u32 %v328, 7
    %v330 = vsub.s32 6, %v329
    %v331 = vrot.slane %v269, %v330
    %v332 = vlaneseq
    %v333 = vshrl.u32 %v332, 7
    %v334 = vsub.s32 7, %v333
    %v335 = vrot.slane %v269, %v334
    %v352 = vsub.f32 %v142, %v275
    %v353 = vsub.f32 %v143, %v279
    %v354 = vsub.f32 %v144, %v283
    %v355 = vsub.f32 %v145, %v287
    %v356 = vsub.f32 %v146, %v291
    %v357 = vsub.f32 %v147, %v295
    %v358 = vsub.f32 %v148, %v299
    %v359 = vsub.f32 %v149, %v303
    %v360 = vsub.f32 %v150, %v307
    %v361 = vsub.f32 %v151, %v311
    %v362 = vsub.f32 %v152, %v315
    %v363 = vsub.f32 %v153, %v319
    %v364 = vsub.f32 %v154, %v323
    %v365 = vsub.f32 %v155, %v327
    %v366 = vsub.f32 %v156, %v331
    %v367 = vsub.f32 %v157, %v335
    %v368 = vmul.f32 %v352, 1.442695
    %v369 = vpow.pop %v368
    %v370 = vmul.f32 %v353, 1.442695
    %v371 = vpow.pop %v370
    %v372 = vmul.f32 %v354, 1.442695
    %v373 = vpow.pop %v372
    %v374 = vmul.f32 %v355, 1.442695
    %v375 = vpow.pop %v374
    %v376 = vmul.f32 %v356, 1.442695
    %v377 = vpow.pop %v376
    %v378 = vmul.f32 %v357, 1.442695
    %v379 = vpow.pop %v378
    %v380 = vmul.f32 %v358, 1.442695
    %v381 = vpow.pop %v380
    %v382 = vmul.f32 %v359, 1.442695
    %v383 = vpow.pop %v382
    %v384 = vmul.f32 %v360, 1.442695
    %v385 = vpow.pop %v384
    %v386 = vmul.f32 %v361, 1.442695
    %v387 = vpow.pop %v386
    %v388 = vmul.f32 %v362, 1.442695
    %v389 = vpow.pop %v388
    %v390 = vmul.f32 %v363, 1.442695
    %v391 = vpow.pop %v390
    %v392 = vmul.f32 %v364, 1.442695
    %v393 = vpow.pop %v392
    %v394 = vmul.f32 %v365, 1.442695
    %v395 = vpow.pop %v394
    %v396 = vmul.f32 %v366, 1.442695
    %v397 = vpow.pop %v396
    %v398 = vmul.f32 %v367, 1.442695
    %v399 = vpow.pop %v398
    %v400 = vld [vmem:[%s4] sm:$0xff]
    %v401 = vld [vmem:[%s4 + $0x8] sm:$0xff]
    %vm402 = vcmp.ne.s32.totalorder %v400, 0
    %vm403 = vcmp.ne.s32.totalorder %v401, 0
    %v404 = vsel %vm402, 1, 0
    %v405 = vsel %vm403, 1, 0
    %v406 = vcvt.s32.f32 %v404
    %v407 = vcvt.s32.f32 %v405
    %v410 = vlaneseq
    %v411 = vshrl.u32 %v410, 7
    %v412 = vsub.s32 0, %v411
    %v413 = vrot.slane %v406, %v412
    %415 = vbcast.lane.b32.xlu0 %v413, 256
    %v416 = vpop.permute.xlu0 %415
    %v417 = vlaneseq
    %v418 = vshrl.u32 %v417, 7
    %v419 = vsub.s32 1, %v418
    %v420 = vrot.slane %v406, %v419
    %422 = vbcast.lane.b32.xlu0 %v420, 256
    %v423 = vpop.permute.xlu0 %422
    %v424 = vlaneseq
    %v425 = vshrl.u32 %v424, 7
    %v426 = vsub.s32 2, %v425
    %v427 = vrot.slane %v406, %v426
    %429 = vbcast.lane.b32.xlu0 %v427, 256
    %v430 = vpop.permute.xlu0 %429
    %v431 = vlaneseq
    %v432 = vshrl.u32 %v431, 7
    %v433 = vsub.s32 3, %v432
    %v434 = vrot.slane %v406, %v433
    %436 = vbcast.lane.b32.xlu0 %v434, 256
    %v437 = vpop.permute.xlu0 %436
    %v438 = vlaneseq
    %v439 = vshrl.u32 %v438, 7
    %v440 = vsub.s32 4, %v439
    %v441 = vrot.slane %v406, %v440
    %443 = vbcast.lane.b32.xlu0 %v441, 256
    %v444 = vpop.permute.xlu0 %443
    %v445 = vlaneseq
    %v446 = vshrl.u32 %v445, 7
    %v447 = vsub.s32 5, %v446
    %v448 = vrot.slane %v406, %v447
    %450 = vbcast.lane.b32.xlu0 %v448, 256
    %v451 = vpop.permute.xlu0 %450
    %v452 = vlaneseq
    %v453 = vshrl.u32 %v452, 7
    %v454 = vsub.s32 6, %v453
    %v455 = vrot.slane %v406, %v454
    %457 = vbcast.lane.b32.xlu0 %v455, 256
    %v458 = vpop.permute.xlu0 %457
    %v459 = vlaneseq
    %v460 = vshrl.u32 %v459, 7
    %v461 = vsub.s32 7, %v460
    %v462 = vrot.slane %v406, %v461
    %464 = vbcast.lane.b32.xlu0 %v462, 256
    %v465 = vpop.permute.xlu0 %464
    %v466 = vlaneseq
    %v467 = vshrl.u32 %v466, 7
    %v468 = vsub.s32 0, %v467
    %v469 = vrot.slane %v407, %v468
    %471 = vbcast.lane.b32.xlu0 %v469, 256
    %v472 = vpop.permute.xlu0 %471
    %v473 = vlaneseq
    %v474 = vshrl.u32 %v473, 7
    %v475 = vsub.s32 1, %v474
    %v476 = vrot.slane %v407, %v475
    %478 = vbcast.lane.b32.xlu0 %v476, 256
    %v479 = vpop.permute.xlu0 %478
    %v480 = vlaneseq
    %v481 = vshrl.u32 %v480, 7
    %v482 = vsub.s32 2, %v481
    %v483 = vrot.slane %v407, %v482
    %485 = vbcast.lane.b32.xlu0 %v483, 256
    %v486 = vpop.permute.xlu0 %485
    %v487 = vlaneseq
    %v488 = vshrl.u32 %v487, 7
    %v489 = vsub.s32 3, %v488
    %v490 = vrot.slane %v407, %v489
    %492 = vbcast.lane.b32.xlu0 %v490, 256
    %v493 = vpop.permute.xlu0 %492
    %v494 = vlaneseq
    %v495 = vshrl.u32 %v494, 7
    %v496 = vsub.s32 4, %v495
    %v497 = vrot.slane %v407, %v496
    %499 = vbcast.lane.b32.xlu0 %v497, 256
    %v500 = vpop.permute.xlu0 %499
    %v501 = vlaneseq
    %v502 = vshrl.u32 %v501, 7
    %v503 = vsub.s32 5, %v502
    %v504 = vrot.slane %v407, %v503
    %506 = vbcast.lane.b32.xlu0 %v504, 256
    %v507 = vpop.permute.xlu0 %506
    %v508 = vlaneseq
    %v509 = vshrl.u32 %v508, 7
    %v510 = vsub.s32 6, %v509
    %v511 = vrot.slane %v407, %v510
    %513 = vbcast.lane.b32.xlu0 %v511, 256
    %v514 = vpop.permute.xlu0 %513
    %v515 = vlaneseq
    %v516 = vshrl.u32 %v515, 7
    %v517 = vsub.s32 7, %v516
    %v518 = vrot.slane %v407, %v517
    %520 = vbcast.lane.b32.xlu0 %v518, 256
    %v521 = vpop.permute.xlu0 %520
    %v538 = vmul.f32 %v369, %v416
    %v539 = vmul.f32 %v371, %v423
    %v540 = vmul.f32 %v373, %v430
    %v541 = vmul.f32 %v375, %v437
    %v542 = vmul.f32 %v377, %v444
    %v543 = vmul.f32 %v379, %v451
    %v544 = vmul.f32 %v381, %v458
    %v545 = vmul.f32 %v383, %v465
    %v546 = vmul.f32 %v385, %v472
    %v547 = vmul.f32 %v387, %v479
    %v548 = vmul.f32 %v389, %v486
    %v549 = vmul.f32 %v391, %v493
    %v550 = vmul.f32 %v393, %v500
    %v551 = vmul.f32 %v395, %v507
    %v552 = vmul.f32 %v397, %v514
    %v553 = vmul.f32 %v399, %v521
    %570 = vset.pattern.permute.xlu0 0
    %571 = vperm.xlu0 %570, %v538
    %v572 = vpop.permute.xlu0 %571
    %573 = vset.pattern.permute.xlu0 0
    %574 = vperm.xlu0 %573, %v539
    %v575 = vpop.permute.xlu0 %574
    %576 = vset.pattern.permute.xlu0 0
    %577 = vperm.xlu0 %576, %v540
    %v578 = vpop.permute.xlu0 %577
    %579 = vset.pattern.permute.xlu0 0
    %580 = vperm.xlu0 %579, %v541
    %v581 = vpop.permute.xlu0 %580
    %582 = vset.pattern.permute.xlu0 0
    %583 = vperm.xlu0 %582, %v542
    %v584 = vpop.permute.xlu0 %583
    %585 = vset.pattern.permute.xlu0 0
    %586 = vperm.xlu0 %585, %v543
    %v587 = vpop.permute.xlu0 %586
    %588 = vset.pattern.permute.xlu0 0
    %589 = vperm.xlu0 %588, %v544
    %v590 = vpop.permute.xlu0 %589
    %591 = vset.pattern.permute.xlu0 0
    %592 = vperm.xlu0 %591, %v545
    %v593 = vpop.permute.xlu0 %592
    %594 = vset.pattern.permute.xlu0 0
    %595 = vperm.xlu0 %594, %v546
    %v596 = vpop.permute.xlu0 %595
    %597 = vset.pattern.permute.xlu0 0
    %598 = vperm.xlu0 %597, %v547
    %v599 = vpop.permute.xlu0 %598
    %600 = vset.pattern.permute.xlu0 0
    %601 = vperm.xlu0 %600, %v548
    %v602 = vpop.permute.xlu0 %601
    %603 = vset.pattern.permute.xlu0 0
    %604 = vperm.xlu0 %603, %v549
    %v605 = vpop.permute.xlu0 %604
    %606 = vset.pattern.permute.xlu0 0
    %607 = vperm.xlu0 %606, %v550
    %v608 = vpop.permute.xlu0 %607
    %609 = vset.pattern.permute.xlu0 0
    %610 = vperm.xlu0 %609, %v551
    %v611 = vpop.permute.xlu0 %610
    %612 = vset.pattern.permute.xlu0 0
    %613 = vperm.xlu0 %612, %v552
    %v614 = vpop.permute.xlu0 %613
    %615 = vset.pattern.permute.xlu0 0
    %616 = vperm.xlu0 %615, %v553
    %v617 = vpop.permute.xlu0 %616
    %v618 = vlaneseq
    %v619 = vshrl.u32 %v618, 7
    %v620 = vsub.s32 %v175, %v619
    %v621 = vrot.slane %v572, %v620
    %v622 = vlaneseq
    %v623 = vshrl.u32 %v622, 7
    %v624 = vsub.s32 %v175, %v623
    %v625 = vrot.slane %v575, %v624
    %v626 = vlaneseq
    %v627 = vshrl.u32 %v626, 7
    %v628 = vsub.s32 %v175, %v627
    %v629 = vrot.slane %v578, %v628
    %v630 = vlaneseq
    %v631 = vshrl.u32 %v630, 7
    %v632 = vsub.s32 %v175, %v631
    %v633 = vrot.slane %v581, %v632
    %v634 = vlaneseq
    %v635 = vshrl.u32 %v634, 7
    %v636 = vsub.s32 %v175, %v635
    %v637 = vrot.slane %v584, %v636
    %v638 = vlaneseq
    %v639 = vshrl.u32 %v638, 7
    %v640 = vsub.s32 %v175, %v639
    %v641 = vrot.slane %v587, %v640
    %v642 = vlaneseq
    %v643 = vshrl.u32 %v642, 7
    %v644 = vsub.s32 %v175, %v643
    %v645 = vrot.slane %v590, %v644
    %v646 = vlaneseq
    %v647 = vshrl.u32 %v646, 7
    %v648 = vsub.s32 %v175, %v647
    %v649 = vrot.slane %v593, %v648
    %v650 = vlaneseq
    %v651 = vshrl.u32 %v650, 7
    %v652 = vsub.s32 %v175, %v651
    %v653 = vrot.slane %v596, %v652
    %v654 = vlaneseq
    %v655 = vshrl.u32 %v654, 7
    %v656 = vsub.s32 %v175, %v655
    %v657 = vrot.slane %v599, %v656
    %v658 = vlaneseq
    %v659 = vshrl.u32 %v658, 7
    %v660 = vsub.s32 %v175, %v659
    %v661 = vrot.slane %v602, %v660
    %v662 = vlaneseq
    %v663 = vshrl.u32 %v662, 7
    %v664 = vsub.s32 %v175, %v663
    %v665 = vrot.slane %v605, %v664
    %v666 = vlaneseq
    %v667 = vshrl.u32 %v666, 7
    %v668 = vsub.s32 %v175, %v667
    %v669 = vrot.slane %v608, %v668
    %v670 = vlaneseq
    %v671 = vshrl.u32 %v670, 7
    %v672 = vsub.s32 %v175, %v671
    %v673 = vrot.slane %v611, %v672
    %v674 = vlaneseq
    %v675 = vshrl.u32 %v674, 7
    %v676 = vsub.s32 %v175, %v675
    %v677 = vrot.slane %v614, %v676
    %v678 = vlaneseq
    %v679 = vshrl.u32 %v678, 7
    %v680 = vsub.s32 %v175, %v679
    %v681 = vrot.slane %v617, %v680
    %v682 = vsel %vm240, %v625, %v621
    %v683 = vsel %vm242, %v629, %v682
    %v684 = vsel %vm244, %v633, %v683
    %v685 = vsel %vm246, %v637, %v684
    %v686 = vsel %vm248, %v641, %v685
    %v687 = vsel %vm250, %v645, %v686
    %v688 = vsel %vm252, %v649, %v687
    %v689 = vsel %vm240, %v657, %v653
    %v690 = vsel %vm242, %v661, %v689
    %v691 = vsel %vm244, %v665, %v690
    %v692 = vsel %vm246, %v669, %v691
    %v693 = vsel %vm248, %v673, %v692
    %v694 = vsel %vm250, %v677, %v693
    %v695 = vsel %vm252, %v681, %v694
    %v698 = vsel %vm263, %v688, 0.0
    %699 = vadd.xlane.f32.xlu0 %v698
    %v700 = vpop.xlane.xlu0 %699
    %v701 = vsel %vm263, %v695, 0.0
    %702 = vadd.xlane.f32.xlu0 %v701
    %v703 = vpop.xlane.xlu0 %702
    %vm704 = vcmp.ne.f32.partialorder %v700, 0.0
    %vm705 = vcmp.ne.f32.partialorder %v703, 0.0
    %v706 = vsel %vm704, %v700, 1.0
    %v707 = vsel %vm705, %v703, 1.0
    %v710 = vlaneseq
    %v711 = vshrl.u32 %v710, 7
    %v712 = vsub.s32 0, %v711
    %v713 = vrot.slane %v706, %v712
    %v714 = vlaneseq
    %v715 = vshrl.u32 %v714, 7
    %v716 = vsub.s32 1, %v715
    %v717 = vrot.slane %v706, %v716
    %v718 = vlaneseq
    %v719 = vshrl.u32 %v718, 7
    %v720 = vsub.s32 2, %v719
    %v721 = vrot.slane %v706, %v720
    %v722 = vlaneseq
    %v723 = vshrl.u32 %v722, 7
    %v724 = vsub.s32 3, %v723
    %v725 = vrot.slane %v706, %v724
    %v726 = vlaneseq
    %v727 = vshrl.u32 %v726, 7
    %v728 = vsub.s32 4, %v727
    %v729 = vrot.slane %v706, %v728
    %v730 = vlaneseq
    %v731 = vshrl.u32 %v730, 7
    %v732 = vsub.s32 5, %v731
    %v733 = vrot.slane %v706, %v732
    %v734 = vlaneseq
    %v735 = vshrl.u32 %v734, 7
    %v736 = vsub.s32 6, %v735
    %v737 = vrot.slane %v706, %v736
    %v738 = vlaneseq
    %v739 = vshrl.u32 %v738, 7
    %v740 = vsub.s32 7, %v739
    %v741 = vrot.slane %v706, %v740
    %v742 = vlaneseq
    %v743 = vshrl.u32 %v742, 7
    %v744 = vsub.s32 0, %v743
    %v745 = vrot.slane %v707, %v744
    %v746 = vlaneseq
    %v747 = vshrl.u32 %v746, 7
    %v748 = vsub.s32 1, %v747
    %v749 = vrot.slane %v707, %v748
    %v750 = vlaneseq
    %v751 = vshrl.u32 %v750, 7
    %v752 = vsub.s32 2, %v751
    %v753 = vrot.slane %v707, %v752
    %v754 = vlaneseq
    %v755 = vshrl.u32 %v754, 7
    %v756 = vsub.s32 3, %v755
    %v757 = vrot.slane %v707, %v756
    %v758 = vlaneseq
    %v759 = vshrl.u32 %v758, 7
    %v760 = vsub.s32 4, %v759
    %v761 = vrot.slane %v707, %v760
    %v762 = vlaneseq
    %v763 = vshrl.u32 %v762, 7
    %v764 = vsub.s32 5, %v763
    %v765 = vrot.slane %v707, %v764
    %v766 = vlaneseq
    %v767 = vshrl.u32 %v766, 7
    %v768 = vsub.s32 6, %v767
    %v769 = vrot.slane %v707, %v768
    %v770 = vlaneseq
    %v771 = vshrl.u32 %v770, 7
    %v772 = vsub.s32 7, %v771
    %v773 = vrot.slane %v707, %v772
    %v790 = vrcp.pop %v713
    %v791 = vmul.f32 %v538, %v790
    %v792 = vrcp.pop %v717
    %v793 = vmul.f32 %v539, %v792
    %v794 = vrcp.pop %v721
    %v795 = vmul.f32 %v540, %v794
    %v796 = vrcp.pop %v725
    %v797 = vmul.f32 %v541, %v796
    %v798 = vrcp.pop %v729
    %v799 = vmul.f32 %v542, %v798
    %v800 = vrcp.pop %v733
    %v801 = vmul.f32 %v543, %v800
    %v802 = vrcp.pop %v737
    %v803 = vmul.f32 %v544, %v802
    %v804 = vrcp.pop %v741
    %v805 = vmul.f32 %v545, %v804
    %v806 = vrcp.pop %v745
    %v807 = vmul.f32 %v546, %v806
    %v808 = vrcp.pop %v749
    %v809 = vmul.f32 %v547, %v808
    %v810 = vrcp.pop %v753
    %v811 = vmul.f32 %v548, %v810
    %v812 = vrcp.pop %v757
    %v813 = vmul.f32 %v549, %v812
    %v814 = vrcp.pop %v761
    %v815 = vmul.f32 %v550, %v814
    %v816 = vrcp.pop %v765
    %v817 = vmul.f32 %v551, %v816
    %v818 = vrcp.pop %v769
    %v819 = vmul.f32 %v552, %v818
    %v820 = vrcp.pop %v773
    %v821 = vmul.f32 %v553, %v820
    %838 = vset.pattern.permute.xlu0 0
    %839 = vperm.xlu0 %838, %v791
    %v840 = vpop.permute.xlu0 %839
    %841 = vset.pattern.permute.xlu0 0
    %842 = vperm.xlu0 %841, %v793
    %v843 = vpop.permute.xlu0 %842
    %844 = vset.pattern.permute.xlu0 0
    %845 = vperm.xlu0 %844, %v795
    %v846 = vpop.permute.xlu0 %845
    %847 = vset.pattern.permute.xlu0 0
    %848 = vperm.xlu0 %847, %v797
    %v849 = vpop.permute.xlu0 %848
    %850 = vset.pattern.permute.xlu0 0
    %851 = vperm.xlu0 %850, %v799
    %v852 = vpop.permute.xlu0 %851
    %853 = vset.pattern.permute.xlu0 0
    %854 = vperm.xlu0 %853, %v801
    %v855 = vpop.permute.xlu0 %854
    %856 = vset.pattern.permute.xlu0 0
    %857 = vperm.xlu0 %856, %v803
    %v858 = vpop.permute.xlu0 %857
    %859 = vset.pattern.permute.xlu0 0
    %860 = vperm.xlu0 %859, %v805
    %v861 = vpop.permute.xlu0 %860
    %862 = vset.pattern.permute.xlu0 0
    %863 = vperm.xlu0 %862, %v807
    %v864 = vpop.permute.xlu0 %863
    %865 = vset.pattern.permute.xlu0 0
    %866 = vperm.xlu0 %865, %v809
    %v867 = vpop.permute.xlu0 %866
    %868 = vset.pattern.permute.xlu0 0
    %869 = vperm.xlu0 %868, %v811
    %v870 = vpop.permute.xlu0 %869
    %871 = vset.pattern.permute.xlu0 0
    %872 = vperm.xlu0 %871, %v813
    %v873 = vpop.permute.xlu0 %872
    %874 = vset.pattern.permute.xlu0 0
    %875 = vperm.xlu0 %874, %v815
    %v876 = vpop.permute.xlu0 %875
    %877 = vset.pattern.permute.xlu0 0
    %878 = vperm.xlu0 %877, %v817
    %v879 = vpop.permute.xlu0 %878
    %880 = vset.pattern.permute.xlu0 0
    %881 = vperm.xlu0 %880, %v819
    %v882 = vpop.permute.xlu0 %881
    %883 = vset.pattern.permute.xlu0 0
    %884 = vperm.xlu0 %883, %v821
    %v885 = vpop.permute.xlu0 %884
    %v886 = vlaneseq
    %v887 = vshrl.u32 %v886, 7
    %v888 = vsub.s32 %v175, %v887
    %v889 = vrot.slane %v840, %v888
    %v890 = vlaneseq
    %v891 = vshrl.u32 %v890, 7
    %v892 = vsub.s32 %v175, %v891
    %v893 = vrot.slane %v843, %v892
    %v894 = vlaneseq
    %v895 = vshrl.u32 %v894, 7
    %v896 = vsub.s32 %v175, %v895
    %v897 = vrot.slane %v846, %v896
    %v898 = vlaneseq
    %v899 = vshrl.u32 %v898, 7
    %v900 = vsub.s32 %v175, %v899
    %v901 = vrot.slane %v849, %v900
    %v902 = vlaneseq
    %v903 = vshrl.u32 %v902, 7
    %v904 = vsub.s32 %v175, %v903
    %v905 = vrot.slane %v852, %v904
    %v906 = vlaneseq
    %v907 = vshrl.u32 %v906, 7
    %v908 = vsub.s32 %v175, %v907
    %v909 = vrot.slane %v855, %v908
    %v910 = vlaneseq
    %v911 = vshrl.u32 %v910, 7
    %v912 = vsub.s32 %v175, %v911
    %v913 = vrot.slane %v858, %v912
    %v914 = vlaneseq
    %v915 = vshrl.u32 %v914, 7
    %v916 = vsub.s32 %v175, %v915
    %v917 = vrot.slane %v861, %v916
    %v918 = vlaneseq
    %v919 = vshrl.u32 %v918, 7
    %v920 = vsub.s32 %v175, %v919
    %v921 = vrot.slane %v864, %v920
    %v922 = vlaneseq
    %v923 = vshrl.u32 %v922, 7
    %v924 = vsub.s32 %v175, %v923
    %v925 = vrot.slane %v867, %v924
    %v926 = vlaneseq
    %v927 = vshrl.u32 %v926, 7
    %v928 = vsub.s32 %v175, %v927
    %v929 = vrot.slane %v870, %v928
    %v930 = vlaneseq
    %v931 = vshrl.u32 %v930, 7
    %v932 = vsub.s32 %v175, %v931
    %v933 = vrot.slane %v873, %v932
    %v934 = vlaneseq
    %v935 = vshrl.u32 %v934, 7
    %v936 = vsub.s32 %v175, %v935
    %v937 = vrot.slane %v876, %v936
    %v938 = vlaneseq
    %v939 = vshrl.u32 %v938, 7
    %v940 = vsub.s32 %v175, %v939
    %v941 = vrot.slane %v879, %v940
    %v942 = vlaneseq
    %v943 = vshrl.u32 %v942, 7
    %v944 = vsub.s32 %v175, %v943
    %v945 = vrot.slane %v882, %v944
    %v946 = vlaneseq
    %v947 = vshrl.u32 %v946, 7
    %v948 = vsub.s32 %v175, %v947
    %v949 = vrot.slane %v885, %v948
    %v950 = vsel %vm240, %v893, %v889
    %v951 = vsel %vm242, %v897, %v950
    %v952 = vsel %vm244, %v901, %v951
    %v953 = vsel %vm246, %v905, %v952
    %v954 = vsel %vm248, %v909, %v953
    %v955 = vsel %vm250, %v913, %v954
    %v956 = vsel %vm252, %v917, %v955
    %v957 = vsel %vm240, %v925, %v921
    %v958 = vsel %vm242, %v929, %v957
    %v959 = vsel %vm244, %v933, %v958
    %v960 = vsel %vm246, %v937, %v959
    %v961 = vsel %vm248, %v941, %v960
    %v962 = vsel %vm250, %v945, %v961
    %v963 = vsel %vm252, %v949, %v962
    %966 = vst.msk [vmem:[%s6] sm:$0xff] %vm263, %v956
    %967 = vst.msk [vmem:[%s6 + $0x8] sm:$0xff] %vm263, %v963
    %v968 = vld [vmem:[#allocation6] sm:$0xff]
    %v969 = vld [vmem:[#allocation6 + $0x8] sm:$0xff]
    %v970 = vld [vmem:[#allocation6 + $0x10] sm:$0xff]
    %v971 = vld [vmem:[#allocation6 + $0x18] sm:$0xff]
    %v972 = vld [vmem:[#allocation6 + $0x20] sm:$0xff]
    %v973 = vld [vmem:[#allocation6 + $0x28] sm:$0xff]
    %v974 = vld [vmem:[#allocation6 + $0x30] sm:$0xff]
    %v975 = vld [vmem:[#allocation6 + $0x38] sm:$0xff]
    %v976 = vld [vmem:[#allocation6 + $0x40] sm:$0xff]
    %v977 = vld [vmem:[#allocation6 + $0x48] sm:$0xff]
    %v978 = vld [vmem:[#allocation6 + $0x50] sm:$0xff]
    %v979 = vld [vmem:[#allocation6 + $0x58] sm:$0xff]
    %v980 = vld [vmem:[#allocation6 + $0x60] sm:$0xff]
    %v981 = vld [vmem:[#allocation6 + $0x68] sm:$0xff]
    %v982 = vld [vmem:[#allocation6 + $0x70] sm:$0xff]
    %v983 = vld [vmem:[#allocation6 + $0x78] sm:$0xff]
    %v1000 = vmul.f32 %v840, %v968
    %v1001 = vmul.f32 %v843, %v969
    %v1002 = vmul.f32 %v846, %v970
    %v1003 = vmul.f32 %v849, %v971
    %v1004 = vmul.f32 %v852, %v972
    %v1005 = vmul.f32 %v855, %v973
    %v1006 = vmul.f32 %v858, %v974
    %v1007 = vmul.f32 %v861, %v975
    %v1008 = vmul.f32 %v864, %v976
    %v1009 = vmul.f32 %v867, %v977
    %v1010 = vmul.f32 %v870, %v978
    %v1011 = vmul.f32 %v873, %v979
    %v1012 = vmul.f32 %v876, %v980
    %v1013 = vmul.f32 %v879, %v981
    %v1014 = vmul.f32 %v882, %v982
    %v1015 = vmul.f32 %v885, %v983
    %v1016 = vsel %vm92, %v1000, 0.0
    %v1017 = vrot.slane %v1016, 4
    %v1018 = vadd.f32 %v1016, %v1017
    %v1019 = vrot.slane %v1018, 2
    %v1020 = vadd.f32 %v1018, %v1019
    %v1021 = vrot.slane %v1020, 1
    %v1022 = vadd.f32 %v1020, %v1021
    %v1023 = vsel %vm92, %v1001, 0.0
    %v1024 = vrot.slane %v1023, 4
    %v1025 = vadd.f32 %v1023, %v1024
    %v1026 = vrot.slane %v1025, 2
    %v1027 = vadd.f32 %v1025, %v1026
    %v1028 = vrot.slane %v1027, 1
    %v1029 = vadd.f32 %v1027, %v1028
    %v1030 = vsel %vm92, %v1002, 0.0
    %v1031 = vrot.slane %v1030, 4
    %v1032 = vadd.f32 %v1030, %v1031
    %v1033 = vrot.slane %v1032, 2
    %v1034 = vadd.f32 %v1032, %v1033
    %v1035 = vrot.slane %v1034, 1
    %v1036 = vadd.f32 %v1034, %v1035
    %v1037 = vsel %vm92, %v1003, 0.0
    %v1038 = vrot.slane %v1037, 4
    %v1039 = vadd.f32 %v1037, %v1038
    %v1040 = vrot.slane %v1039, 2
    %v1041 = vadd.f32 %v1039, %v1040
    %v1042 = vrot.slane %v1041, 1
    %v1043 = vadd.f32 %v1041, %v1042
    %v1044 = vsel %vm92, %v1004, 0.0
    %v1045 = vrot.slane %v1044, 4
    %v1046 = vadd.f32 %v1044, %v1045
    %v1047 = vrot.slane %v1046, 2
    %v1048 = vadd.f32 %v1046, %v1047
    %v1049 = vrot.slane %v1048, 1
    %v1050 = vadd.f32 %v1048, %v1049
    %v1051 = vsel %vm92, %v1005, 0.0
    %v1052 = vrot.slane %v1051, 4
    %v1053 = vadd.f32 %v1051, %v1052
    %v1054 = vrot.slane %v1053, 2
    %v1055 = vadd.f32 %v1053, %v1054
    %v1056 = vrot.slane %v1055, 1
    %v1057 = vadd.f32 %v1055, %v1056
    %v1058 = vsel %vm92, %v1006, 0.0
    %v1059 = vrot.slane %v1058, 4
    %v1060 = vadd.f32 %v1058, %v1059
    %v1061 = vrot.slane %v1060, 2
    %v1062 = vadd.f32 %v1060, %v1061
    %v1063 = vrot.slane %v1062, 1
    %v1064 = vadd.f32 %v1062, %v1063
    %v1065 = vsel %vm92, %v1007, 0.0
    %v1066 = vrot.slane %v1065, 4
    %v1067 = vadd.f32 %v1065, %v1066
    %v1068 = vrot.slane %v1067, 2
    %v1069 = vadd.f32 %v1067, %v1068
    %v1070 = vrot.slane %v1069, 1
    %v1071 = vadd.f32 %v1069, %v1070
    %v1072 = vsel %vm92, %v1008, 0.0
    %v1073 = vrot.slane %v1072, 4
    %v1074 = vadd.f32 %v1072, %v1073
    %v1075 = vrot.slane %v1074, 2
    %v1076 = vadd.f32 %v1074, %v1075
    %v1077 = vrot.slane %v1076, 1
    %v1078 = vadd.f32 %v1076, %v1077
    %v1079 = vsel %vm92, %v1009, 0.0
    %v1080 = vrot.slane %v1079, 4
    %v1081 = vadd.f32 %v1079, %v1080
    %v1082 = vrot.slane %v1081, 2
    %v1083 = vadd.f32 %v1081, %v1082
    %v1084 = vrot.slane %v1083, 1
    %v1085 = vadd.f32 %v1083, %v1084
    %v1086 = vsel %vm92, %v1010, 0.0
    %v1087 = vrot.slane %v1086, 4
    %v1088 = vadd.f32 %v1086, %v1087
    %v1089 = vrot.slane %v1088, 2
    %v1090 = vadd.f32 %v1088, %v1089
    %v1091 = vrot.slane %v1090, 1
    %v1092 = vadd.f32 %v1090, %v1091
    %v1093 = vsel %vm92, %v1011, 0.0
    %v1094 = vrot.slane %v1093, 4
    %v1095 = vadd.f32 %v1093, %v1094
    %v1096 = vrot.slane %v1095, 2
    %v1097 = vadd.f32 %v1095, %v1096
    %v1098 = vrot.slane %v1097, 1
    %v1099 = vadd.f32 %v1097, %v1098
    %v1100 = vsel %vm92, %v1012, 0.0
    %v1101 = vrot.slane %v1100, 4
    %v1102 = vadd.f32 %v1100, %v1101
    %v1103 = vrot.slane %v1102, 2
    %v1104 = vadd.f32 %v1102, %v1103
    %v1105 = vrot.slane %v1104, 1
    %v1106 = vadd.f32 %v1104, %v1105
    %v1107 = vsel %vm92, %v1013, 0.0
    %v1108 = vrot.slane %v1107, 4
    %v1109 = vadd.f32 %v1107, %v1108
    %v1110 = vrot.slane %v1109, 2
    %v1111 = vadd.f32 %v1109, %v1110
    %v1112 = vrot.slane %v1111, 1
    %v1113 = vadd.f32 %v1111, %v1112
    %v1114 = vsel %vm92, %v1014, 0.0
    %v1115 = vrot.slane %v1114, 4
    %v1116 = vadd.f32 %v1114, %v1115
    %v1117 = vrot.slane %v1116, 2
    %v1118 = vadd.f32 %v1116, %v1117
    %v1119 = vrot.slane %v1118, 1
    %v1120 = vadd.f32 %v1118, %v1119
    %v1121 = vsel %vm92, %v1015, 0.0
    %v1122 = vrot.slane %v1121, 4
    %v1123 = vadd.f32 %v1121, %v1122
    %v1124 = vrot.slane %v1123, 2
    %v1125 = vadd.f32 %v1123, %v1124
    %v1126 = vrot.slane %v1125, 1
    %v1127 = vadd.f32 %v1125, %v1126
    %v1144 = vsel %vm240, %v1029, %v1022
    %v1145 = vsel %vm242, %v1036, %v1144
    %v1146 = vsel %vm244, %v1043, %v1145
    %v1147 = vsel %vm246, %v1050, %v1146
    %v1148 = vsel %vm248, %v1057, %v1147
    %v1149 = vsel %vm250, %v1064, %v1148
    %v1150 = vsel %vm252, %v1071, %v1149
    %v1151 = vsel %vm240, %v1085, %v1078
    %v1152 = vsel %vm242, %v1092, %v1151
    %v1153 = vsel %vm244, %v1099, %v1152
    %v1154 = vsel %vm246, %v1106, %v1153
    %v1155 = vsel %vm248, %v1113, %v1154
    %v1156 = vsel %vm250, %v1120, %v1155
    %v1157 = vsel %vm252, %v1127, %v1156
    %1160 = vst.msk [vmem:[#allocation8] sm:$0xff] %vm92, %v1150
    %1161 = vst.msk [vmem:[#allocation8 + $0x8] sm:$0xff] %vm92, %v1157
    // Predicated region
    $region30: #{tpu_custom_call.1} parent=1 // pred_check
      _
    $region31: #{tpu_custom_call.1} parent=1 // pred_check_branch
      %1163 = sbr.rel (0) target = $region33
    $region32: #{tpu_custom_call.1} parent=1 // pred_region
      %s1165 = ssub.s32 256, 256
      %1166 = vsyncadd [#allocation5], %s1165
      %s1167 = sshll.u32 [#allocation8], 4
      %s1168 = int_to_ptr.vmem [resolvable:$true] %s1167
      %1173 = dma.vmem_to_hbm [thread:$0]  %s1168, 256, %s5, [#allocation5], 128, 128, 8
    $region33: #{tpu_custom_call.1} parent=1 // pred_fallthru
      _
    // Predicated region
    $region34: #{tpu_custom_call.1} parent=1 // pred_check
      _
    $region35: #{tpu_custom_call.1} parent=1 // pred_check_branch
      %1175 = sbr.rel (0) target = $region37
    $region36: #{tpu_custom_call.1} parent=1 // pred_region
      _
    $region37: #{tpu_custom_call.1} parent=1 // pred_fallthru
      _
    // Predicated region
    $region38: #{tpu_custom_call.1} parent=1 // pred_check
      _
    $region39: #{tpu_custom_call.1} parent=1 // pred_check_branch
      %1177 = sbr.rel (0) target = $region41
    $region40: #{tpu_custom_call.1} parent=1 // pred_region
      %1178 = dma.done [#allocation5], 256
    $region41: #{tpu_custom_call.1} parent=1 // pred_fallthru
      _
    // Predicated region
    $region42: #{tpu_custom_call.1} parent=1 // pred_check
      _
    $region43: #{tpu_custom_call.1} parent=1 // pred_check_branch
      %1180 = sbr.rel (0) target = $region45
    $region44: #{tpu_custom_call.1} parent=1 // pred_region
      _
    $region45: #{tpu_custom_call.1} parent=1 // pred_fallthru
      _
    %1181 = vsyncpa [#allocation4], 1
    %1182 = vsyncpa [#allocation7], 1
    %1183 = vsyncpa [#allocation5], 1

</llo_original>
